<compile_context>
chip_gen: v7x
topology: tpu7x:2x2x1
jax: 0.10.0
libtpu: 0.0.40
codegen_flags: <defaults>
</compile_context>

<pallas_src>
import math

import jax
import jax.numpy as jnp
from jax import lax
from jax.experimental import pallas as pl
from jax.experimental.pallas import tpu as pltpu


# --------------------------------------------------------------------------
# Small helpers
# --------------------------------------------------------------------------

_COMPILER_PARAMS = pltpu.CompilerParams(dimension_semantics=("arbitrary",))


def _full_spec(shape):
    """Whole-array VMEM block (block_shape == array shape, grid=(1,))."""
    zeros = (0,) * len(shape)
    return pl.BlockSpec(shape, lambda i: zeros)


def _fused_call(kernel, args, out_shape):
    if isinstance(out_shape, (list, tuple)):
        out_specs = tuple(_full_spec(s.shape) for s in out_shape)
    else:
        out_specs = _full_spec(out_shape.shape)
    return pl.pallas_call(
        kernel,
        out_shape=out_shape,
        grid=(1,),
        in_specs=[_full_spec(a.shape) for a in args],
        out_specs=out_specs,
        compiler_params=_COMPILER_PARAMS,
    )(*args)


def _elu(v):
    # ELU(alpha=1); expm1 on the clamped branch is the numerically safe form.
    return jnp.where(v > 0.0, v, jnp.expm1(jnp.minimum(v, 0.0)))


# --------------------------------------------------------------------------
# Fused kernel bodies
# --------------------------------------------------------------------------

def _meta_body(x, ea, row, col, inv_deg,
               we_s, we_d, we_e, be,
               w1_x, w1_e, b1,
               w2_x, w2_a, b2):
    """Shared MetaLayer math on VMEM-resident values. Returns (x_new, e_new)."""
    n_nodes = x.shape[0]
    n_edges = ea.shape[0]
    f32 = jnp.float32

    # x[row] / x[col] gathers as one-hot MXU matmuls (stay in VMEM).
    node_ids = lax.broadcasted_iota(jnp.int32, (n_edges, n_nodes), 1)
    g_row = (node_ids == row[:, None]).astype(f32)              # (E, N)
    g_col = (node_ids == col[:, None]).astype(f32)              # (E, N)
    src = jnp.dot(g_row, x, preferred_element_type=f32)         # x[row]
    dst = jnp.dot(g_col, x, preferred_element_type=f32)         # x[col]

    # EdgeModel: ELU(BN(Linear(cat[src, dst, ea])))  -- BN folded into the
    # weights, concat-matmul split along K.
    e_new = _elu(jnp.dot(src, we_s, preferred_element_type=f32)
                 + jnp.dot(dst, we_d, preferred_element_type=f32)
                 + jnp.dot(ea, we_e, preferred_element_type=f32)
                 + be)

    # NodeModel mlp1 on cat[x[row], e_new].
    msg = _elu(jnp.dot(src, w1_x, preferred_element_type=f32)
               + jnp.dot(e_new, w1_e, preferred_element_type=f32)
               + b1)

    # scatter_mean(msg, col, dim_size=N): one-hot scatter matmul (MXU) times
    # the precomputed per-node 1/degree.
    scat_ids = lax.broadcasted_iota(jnp.int32, (n_nodes, n_edges), 0)
    s_col = (scat_ids == col[None, :]).astype(f32)              # (N, E)
    agg = jnp.dot(s_col, msg, preferred_element_type=f32) * inv_deg

    # NodeModel mlp2 on cat[x, agg].
    x_new = _elu(jnp.dot(x, w2_x, preferred_element_type=f32)
                 + jnp.dot(agg, w2_a, preferred_element_type=f32)
                 + b2)
    return x_new, e_new


def _meta_layer_kernel(row_ref, col_ref, invd_ref, x_ref, ea_ref,
                       we_s_ref, we_d_ref, we_e_ref, be_ref,
                       w1_x_ref, w1_e_ref, b1_ref,
                       w2_x_ref, w2_a_ref, b2_ref,
                       x_out_ref, ea_out_ref):
    x_new, e_new = _meta_body(
        x_ref[...], ea_ref[...], row_ref[0, :], col_ref[0, :], invd_ref[...],
        we_s_ref[...], we_d_ref[...], we_e_ref[...], be_ref[...],
        w1_x_ref[...], w1_e_ref[...], b1_ref[...],
        w2_x_ref[...], w2_a_ref[...], b2_ref[...])
    x_out_ref[...] = x_new
    ea_out_ref[...] = e_new


def _res_block_kernel(row_ref, col_ref, invd_ref, x_ref, ea_ref,
                      wpdn_ref, bpdn_ref, wpde_ref, bpde_ref,
                      we_s_ref, we_d_ref, we_e_ref, be_ref,
                      w1_x_ref, w1_e_ref, b1_ref,
                      w2_x_ref, w2_a_ref, b2_ref,
                      wpun_ref, bpun_ref, wpue_ref, bpue_ref,
                      x_out_ref, ea_out_ref):
    f32 = jnp.float32
    x = x_ref[...]
    ea = ea_ref[...]

    # projectDown + BN1 (folded) + ELU.
    h_node = _elu(jnp.dot(x, wpdn_ref[...], preferred_element_type=f32)
                  + bpdn_ref[...])
    h_edge = _elu(jnp.dot(ea, wpde_ref[...], preferred_element_type=f32)
                  + bpde_ref[...])

    # Inner MetaLayer at C // 4 channels (same edge_index).
    h_node, h_edge = _meta_body(
        h_node, h_edge, row_ref[0, :], col_ref[0, :], invd_ref[...],
        we_s_ref[...], we_d_ref[...], we_e_ref[...], be_ref[...],
        w1_x_ref[...], w1_e_ref[...], b1_ref[...],
        w2_x_ref[...], w2_a_ref[...], b2_ref[...])

    # projectUp + BN2 (folded; dropout = identity in eval) + residual + ELU,
    # fused so the residual never round-trips HBM.
    up_n = jnp.dot(h_node, wpun_ref[...], preferred_element_type=f32) + bpun_ref[...]
    x_out_ref[...] = _elu(up_n + x)
    up_e = jnp.dot(h_edge, wpue_ref[...], preferred_element_type=f32) + bpue_ref[...]
    ea_out_ref[...] = _elu(up_e + ea)


def _linear_kernel(x_ref, w_ref, b_ref, o_ref):
    o_ref[...] = (jnp.dot(x_ref[...], w_ref[...],
                          preferred_element_type=jnp.float32) + b_ref[...])


def _inv_degree_kernel(col_ref, o_ref):
    # 1 / max(in-degree, 1), computed once per forward and reused by every
    # layer's scatter_mean.
    n_nodes = o_ref.shape[0]
    n_edges = col_ref.shape[1]
    col = col_ref[0, :]
    ids = lax.broadcasted_iota(jnp.int32, (n_nodes, n_edges), 0)
    onehot = (ids == col[None, :]).astype(jnp.float32)
    counts = jnp.sum(onehot, axis=1, keepdims=True)
    o_ref[...] = pl.reciprocal(jnp.maximum(counts, 1.0), approx=True)


# --------------------------------------------------------------------------
# Parameter init (BN folded into the Linear weights, concat weights pre-split)
# --------------------------------------------------------------------------

def _init_linear(key, in_f, out_f):
    kw, kb = jax.random.split(key)
    bound = 1.0 / math.sqrt(float(in_f))
    w = jax.random.uniform(kw, (in_f, out_f), jnp.float32, -bound, bound)
    b = jax.random.uniform(kb, (1, out_f), jnp.float32, -bound, bound)
    return w, b


def _bn_affine(out_f, zero_gamma=False):
    # Eval-mode BatchNorm1d with default running stats (mean=0, var=1).
    eps = 1e-5
    gamma = 0.0 if zero_gamma else 1.0
    scale = jnp.full((1, out_f), gamma / math.sqrt(1.0 + eps), jnp.float32)
    shift = jnp.zeros((1, out_f), jnp.float32)
    return scale, shift


def _linear_bn_folded(key, in_f, out_f, zero_gamma=False):
    w, b = _init_linear(key, in_f, out_f)
    scale, shift = _bn_affine(out_f, zero_gamma)
    return w * scale, b * scale + shift


def init_edge_model(key, c):
    w, b = _linear_bn_folded(key, 3 * c, c)
    return {"we_src": w[:c], "we_dst": w[c:2 * c], "we_edge": w[2 * c:], "be": b}


def init_node_model(key, c):
    k1, k2 = jax.random.split(key)
    w1, b1 = _linear_bn_folded(k1, 2 * c, c)
    w2, b2 = _linear_bn_folded(k2, 2 * c, c)
    return {"w1_x": w1[:c], "w1_edge": w1[c:], "b1": b1,
            "w2_x": w2[:c], "w2_agg": w2[c:], "b2": b2}


def init_meta_layer(key, c):
    k1, k2 = jax.random.split(key)
    p = {}
    p.update(init_edge_model(k1, c))
    p.update(init_node_model(k2, c))
    return p


def init_res_block(key, c):
    keys = jax.random.split(key, 5)
    q = c // 4
    wpdn, bpdn = _linear_bn_folded(keys[0], c, q)
    wpde, bpde = _linear_bn_folded(keys[1], c, q)
    conv = init_meta_layer(keys[2], q)
    # nn.init.zeros_(bn2.weight) -> folded projectUp weights are exactly zero.
    wpun, bpun = _linear_bn_folded(keys[3], q, c, zero_gamma=True)
    wpue, bpue = _linear_bn_folded(keys[4], q, c, zero_gamma=True)
    return {"pd_node_w": wpdn, "pd_node_b": bpdn,
            "pd_edge_w": wpde, "pd_edge_b": bpde,
            "conv": conv,
            "pu_node_w": wpun, "pu_node_b": bpun,
            "pu_edge_w": wpue, "pu_edge_b": bpue}


def init_ligand_net(key, in_channels, hidden_dim, residual_layers):
    keys = jax.random.split(key, 4 + residual_layers)
    enc_w, enc_b = _init_linear(keys[0], in_channels, hidden_dim)
    return {"enc_w": enc_w, "enc_b": enc_b,
            "conv1": init_meta_layer(keys[1], hidden_dim),
            "conv2": init_meta_layer(keys[2], hidden_dim),
            "conv3": init_meta_layer(keys[3], hidden_dim),
            "resnet": [init_res_block(keys[4 + i], hidden_dim)
                       for i in range(residual_layers)]}


# --------------------------------------------------------------------------
# Forward pass (one pallas_call per layer; only x/edge_attr cross HBM between
# layers)
# --------------------------------------------------------------------------

def node_encoder_fwd(params, x):
    out_shape = jax.ShapeDtypeStruct((x.shape[0], params["enc_w"].shape[1]),
                                     jnp.float32)
    return _fused_call(_linear_kernel, (x, params["enc_w"], params["enc_b"]),
                       out_shape)


def inv_degree(col2d, num_nodes):
    out_shape = jax.ShapeDtypeStruct((num_nodes, 1), jnp.float32)
    return _fused_call(_inv_degree_kernel, (col2d,), out_shape)


def meta_layer_fwd(p, x, edge_attr, row2d, col2d, inv_deg):
    n, c = x.shape
    e = edge_attr.shape[0]
    args = (row2d, col2d, inv_deg, x, edge_attr,
            p["we_src"], p["we_dst"], p["we_edge"], p["be"],
            p["w1_x"], p["w1_edge"], p["b1"],
            p["w2_x"], p["w2_agg"], p["b2"])
    out_shape = (jax.ShapeDtypeStruct((n, c), jnp.float32),
                 jax.ShapeDtypeStruct((e, c), jnp.float32))
    return _fused_call(_meta_layer_kernel, args, out_shape)


def res_block_fwd(p, x, edge_attr, row2d, col2d, inv_deg):
    n, c = x.shape
    e = edge_attr.shape[0]
    conv = p["conv"]
    args = (row2d, col2d, inv_deg, x, edge_attr,
            p["pd_node_w"], p["pd_node_b"], p["pd_edge_w"], p["pd_edge_b"],
            conv["we_src"], conv["we_dst"], conv["we_edge"], conv["be"],
            conv["w1_x"], conv["w1_edge"], conv["b1"],
            conv["w2_x"], conv["w2_agg"], conv["b2"],
            p["pu_node_w"], p["pu_node_b"], p["pu_edge_w"], p["pu_edge_b"])
    out_shape = (jax.ShapeDtypeStruct((n, c), jnp.float32),
                 jax.ShapeDtypeStruct((e, c), jnp.float32))
    return _fused_call(_res_block_kernel, args, out_shape)


def ligand_net_fwd(params, x, edge_index, edge_attr, local_edge_mask=None):
    if local_edge_mask is not None:
        # Host-side glue (data-dependent shape, not jitted) -- same indexing
        # semantics as the PyTorch module.
        keep = jnp.nonzero(local_edge_mask)[0]
        edge_index = edge_index[:, keep]
        edge_attr = edge_attr[keep, :]
    num_nodes = x.shape[0]
    num_edges = edge_attr.shape[0]
    row2d = edge_index[0].reshape(1, num_edges).astype(jnp.int32)
    col2d = edge_index[1].reshape(1, num_edges).astype(jnp.int32)
    inv_deg = inv_degree(col2d, num_nodes)      # computed once, reused below

    x = node_encoder_fwd(params, x)
    x, edge_attr = meta_layer_fwd(params["conv1"], x, edge_attr, row2d, col2d, inv_deg)
    x, edge_attr = meta_layer_fwd(params["conv2"], x, edge_attr, row2d, col2d, inv_deg)
    x, edge_attr = meta_layer_fwd(params["conv3"], x, edge_attr, row2d, col2d, inv_deg)
    for rb in params["resnet"]:
        x, edge_attr = res_block_fwd(rb, x, edge_attr, row2d, col2d, inv_deg)
    return x, edge_attr


# --------------------------------------------------------------------------

if __name__ == "__main__":
    key = jax.random.PRNGKey(0)
    in_channels = 16
    hidden_dim = 128       # module default; keeps output stores lane-dense
    residual_layers = 2    # small demo resnet (module default is 20)
    num_nodes, num_edges = 64, 128

    k_params, k_x, k_e, k_idx = jax.random.split(key, 4)
    params = init_ligand_net(k_params, in_channels, hidden_dim, residual_layers)

    x = jax.random.normal(k_x, (num_nodes, in_channels), jnp.float32)
    edge_attr = jax.random.normal(k_e, (num_edges, hidden_dim), jnp.float32)
    edge_index = jax.random.randint(k_idx, (2, num_edges), 0, num_nodes,
                                    dtype=jnp.int32)
    local_edge_mask = jnp.arange(num_edges) < 96    # keep first 96 edges

    x_out, e_out = ligand_net_fwd(params, x, edge_index, edge_attr,
                                  local_edge_mask)
    jax.block_until_ready((x_out, e_out))
    assert x_out.shape == (num_nodes, hidden_dim)
    assert e_out.shape == (96, hidden_dim)
    print("KERNEL_OK")
</pallas_src>

<mosaic_0001>
module attributes {stable_mosaic.version = 11 : i64} {
  func.func @_inv_degree_kernel(%arg0: i32, %arg1: memref<1x96xi32, #tpu.memory_space<vmem>>, %arg2: memref<64x1xf32, #tpu.memory_space<vmem>>) attributes {dimension_semantics = [#tpu.dimension_semantics<arbitrary>], iteration_bounds = array<i64: 1>, scalar_prefetch = 0 : i64, scratch_operands = 0 : i64, tpu.core_type = #tpu.core_type<tc>, window_params = [{pipeline_mode = #tpu.pipeline_mode<synchronous>, transform_indices = @transform_0, window_bounds = array<i64: 1, 96>}, {pipeline_mode = #tpu.pipeline_mode<synchronous>, transform_indices = @transform_1, window_bounds = array<i64: 64, 1>}]} {
    %c0 = arith.constant 0 : index
    %c0_0 = arith.constant 0 : index
    %0 = vector.load %arg1[%c0, %c0_0] : memref<1x96xi32, #tpu.memory_space<vmem>>, vector<1x96xi32>
    %1 = vector.shape_cast %0 : vector<1x96xi32> to vector<96xi32>
    %2 = tpu.iota {dimensions = array<i32: 0>} : vector<64x96xi32>
    %3 = vector.shape_cast %1 : vector<96xi32> to vector<1x96xi32>
    %4 = vector.broadcast %3 : vector<1x96xi32> to vector<64x96xi32>
    %5 = arith.cmpi eq, %2, %4 : vector<64x96xi32>
    %6 = arith.extui %5 : vector<64x96xi1> to vector<64x96xi32>
    %7 = arith.sitofp %6 : vector<64x96xi32> to vector<64x96xf32>
    %cst = arith.constant dense<0.000000e+00> : vector<64xf32>
    %8 = vector.multi_reduction <add>, %7, %cst [1] : vector<64x96xf32> to vector<64xf32>
    %9 = vector.shape_cast %8 : vector<64xf32> to vector<64x1xf32>
    %cst_1 = arith.constant 1.000000e+00 : f32
    %10 = vector.broadcast %cst_1 : f32 to vector<64x1xf32>
    %11 = arith.maximumf %9, %10 : vector<64x1xf32>
    %12 = tpu.reciprocal %11 {approx = true} : vector<64x1xf32> -> vector<64x1xf32>
    %c0_2 = arith.constant 0 : index
    %c0_3 = arith.constant 0 : index
    %13 = vector.load %arg2[%c0_2, %c0_3] : memref<64x1xf32, #tpu.memory_space<vmem>>, vector<64x1xf32>
    tpu.vector_store %arg2[%c0_2, %c0_3], %12 {strides = array<i32>} : memref<64x1xf32, #tpu.memory_space<vmem>>, vector<64x1xf32>,
    return
  }
  func.func @transform_0(%arg0: i32) -> (i32, i32) {
    %c0_i32 = arith.constant 0 : i32
    %c0_i32_0 = arith.constant 0 : i32
    %c0_i32_1 = arith.constant 0 : i32
    return %c0_i32, %c0_i32_0 : i32, i32
  }
  func.func @transform_1(%arg0: i32) -> (i32, i32) {
    %c0_i32 = arith.constant 0 : i32
    %c0_i32_0 = arith.constant 0 : i32
    %c0_i32_1 = arith.constant 0 : i32
    return %c0_i32, %c0_i32_0 : i32, i32
  }
}

</mosaic_0001>

<llo_original>
// kernel: tpu_custom_call.1
$region0: #{tpu_custom_call.1}
  #allocation0 [shape = 'u32[]', space=smem, size = 0x4, offset = 0x4, fixed_abs, tag = 'smem constant byte address 0x4 - core index']
  #allocation1 [shape = 'u32[144,128]{1,0:T(1,128)}', space=vmem, size = 0x12000, scoped, tag = 'internal scratch']
  %s0 = inlined_call_operand.hbm [shape: s32[1,96], index: 0, kind: input, shape index: {}]
  %s1 = inlined_call_operand.vmem [shape: f32[64,1], index: 1, kind: output, shape index: {}]
  %s2 = sld [smem:[#allocation0]]
  $region18: #{tpu_custom_call.1} parent=0
    _
  %s4 = ssub.s32 1, %s2
  %s5 = scalar_select 0, %s4, %s2
  $region1: #{tpu_custom_call.1} parent=0
    #allocation2 [shape = 'u8[512]{0}', space=vmem, size = 0x400, scoped, tag = 'input window, operand 0, single buffered']
    #allocation3 [shape = 's32[1]{0}', space=sflag, size = 0x4, scoped, tag = 'scoped memory for tpu_custom_call.1']
    %6 = vsyncpa [#allocation3], 0
    // Predicated region
    $region2: #{tpu_custom_call.1} parent=1 // pred_check
      _
    $region3: #{tpu_custom_call.1} parent=1 // pred_check_branch
      %8 = sbr.rel (0) target = $region5
    $region4: #{tpu_custom_call.1} parent=1 // pred_region
      %s10 = ssub.s32 16, 16
      %11 = vsyncadd [#allocation3], %s10
      %s13 = sshll.u32 [#allocation2], 4
      %s14 = int_to_ptr.vmem [resolvable:$true] %s13
      %16 = dma.hbm_to_vmem [thread:$0]  %s0, 16, %s14, [#allocation3]
    $region5: #{tpu_custom_call.1} parent=1 // pred_fallthru
      _
    // Predicated region
    $region6: #{tpu_custom_call.1} parent=1 // pred_check
      _
    $region7: #{tpu_custom_call.1} parent=1 // pred_check_branch
      %18 = sbr.rel (0) target = $region9
    $region8: #{tpu_custom_call.1} parent=1 // pred_region
      %19 = dma.done [#allocation3], 16
    $region9: #{tpu_custom_call.1} parent=1 // pred_fallthru
      _
    %v20 = vld [vmem:[#allocation2] sm:$0x1]
    %v21 = vlaneseq
    %v22 = vshrl.u32 %v21, 7
    %v23 = vadd.s32 %v22, 8
    %v24 = vadd.s32 %v22, 16
    %v25 = vadd.s32 %v22, 24
    %v26 = vadd.s32 %v22, 32
    %v27 = vadd.s32 %v22, 40
    %v28 = vadd.s32 %v22, 48
    %v29 = vadd.s32 %v22, 56
    %v30 = vlaneseq
    %v31 = vshrl.u32 %v30, 7
    %v32 = vsub.s32 0, %v31
    %v33 = vrot.slane %v20, %v32
    %vm34 = vcmp.eq.s32.totalorder %v22, %v33
    %vm35 = vcmp.eq.s32.totalorder %v23, %v33
    %vm36 = vcmp.eq.s32.totalorder %v24, %v33
    %vm37 = vcmp.eq.s32.totalorder %v25, %v33
    %vm38 = vcmp.eq.s32.totalorder %v26, %v33
    %vm39 = vcmp.eq.s32.totalorder %v27, %v33
    %vm40 = vcmp.eq.s32.totalorder %v28, %v33
    %vm41 = vcmp.eq.s32.totalorder %v29, %v33
    %v42 = vsel %vm34, 1, 0
    %v43 = vsel %vm35, 1, 0
    %v44 = vsel %vm36, 1, 0
    %v45 = vsel %vm37, 1, 0
    %v46 = vsel %vm38, 1, 0
    %v47 = vsel %vm39, 1, 0
    %v48 = vsel %vm40, 1, 0
    %v49 = vsel %vm41, 1, 0
    %v50 = vcvt.s32.f32 %v42
    %v51 = vcvt.s32.f32 %v43
    %v52 = vcvt.s32.f32 %v44
    %v53 = vcvt.s32.f32 %v45
    %v54 = vcvt.s32.f32 %v46
    %v55 = vcvt.s32.f32 %v47
    %v56 = vcvt.s32.f32 %v48
    %v57 = vcvt.s32.f32 %v49
    %vm58 = vcmask 785408
    %v59 = vsel %vm58, %v50, 0.0
    %60 = vadd.xlane.f32.xlu0 %v59
    %v61 = vpop.xlane.xlu0 %60
    %v62 = vsel %vm58, %v51, 0.0
    %63 = vadd.xlane.f32.xlu0 %v62
    %v64 = vpop.xlane.xlu0 %63
    %v65 = vsel %vm58, %v52, 0.0
    %66 = vadd.xlane.f32.xlu0 %v65
    %v67 = vpop.xlane.xlu0 %66
    %v68 = vsel %vm58, %v53, 0.0
    %69 = vadd.xlane.f32.xlu0 %v68
    %v70 = vpop.xlane.xlu0 %69
    %v71 = vsel %vm58, %v54, 0.0
    %72 = vadd.xlane.f32.xlu0 %v71
    %v73 = vpop.xlane.xlu0 %72
    %v74 = vsel %vm58, %v55, 0.0
    %75 = vadd.xlane.f32.xlu0 %v74
    %v76 = vpop.xlane.xlu0 %75
    %v77 = vsel %vm58, %v56, 0.0
    %78 = vadd.xlane.f32.xlu0 %v77
    %v79 = vpop.xlane.xlu0 %78
    %v80 = vsel %vm58, %v57, 0.0
    %81 = vadd.xlane.f32.xlu0 %v80
    %v82 = vpop.xlane.xlu0 %81
    %v83 = vmax.f32 %v61, 1.0
    %v84 = vmax.f32 %v64, 1.0
    %v85 = vmax.f32 %v67, 1.0
    %v86 = vmax.f32 %v70, 1.0
    %v87 = vmax.f32 %v73, 1.0
    %v88 = vmax.f32 %v76, 1.0
    %v89 = vmax.f32 %v79, 1.0
    %v90 = vmax.f32 %v82, 1.0
    %v91 = vrcp.pop %v83
    %v92 = vrcp.pop %v84
    %v93 = vrcp.pop %v85
    %v94 = vrcp.pop %v86
    %v95 = vrcp.pop %v87
    %v96 = vrcp.pop %v88
    %v97 = vrcp.pop %v89
    %v98 = vrcp.pop %v90
    %vm99 = vcmask 7168
    %100 = vst.msk [vmem:[%s1] sm:$0xff] %vm99, %v91
    %101 = vst.msk [vmem:[%s1 + $0x8] sm:$0xff] %vm99, %v92
    %102 = vst.msk [vmem:[%s1 + $0x10] sm:$0xff] %vm99, %v93
    %103 = vst.msk [vmem:[%s1 + $0x18] sm:$0xff] %vm99, %v94
    %104 = vst.msk [vmem:[%s1 + $0x20] sm:$0xff] %vm99, %v95
    %105 = vst.msk [vmem:[%s1 + $0x28] sm:$0xff] %vm99, %v96
    %106 = vst.msk [vmem:[%s1 + $0x30] sm:$0xff] %vm99, %v97
    %107 = vst.msk [vmem:[%s1 + $0x38] sm:$0xff] %vm99, %v98
    // Predicated region
    $region10: #{tpu_custom_call.1} parent=1 // pred_check
      _
    $region11: #{tpu_custom_call.1} parent=1 // pred_check_branch
      %109 = sbr.rel (0) target = $region13
    $region12: #{tpu_custom_call.1} parent=1 // pred_region
      _
    $region13: #{tpu_custom_call.1} parent=1 // pred_fallthru
      _
    // Predicated region
    $region14: #{tpu_custom_call.1} parent=1 // pred_check
      _
    $region15: #{tpu_custom_call.1} parent=1 // pred_check_branch
      %111 = sbr.rel (0) target = $region17
    $region16: #{tpu_custom_call.1} parent=1 // pred_region
      _
    $region17: #{tpu_custom_call.1} parent=1 // pred_fallthru
      _
    %112 = vsyncpa [#allocation3], 1

</llo_original>
